<compile_context>
chip_gen: v7x
topology: tpu7x:2x2x1
jax: 0.10.0
libtpu: 0.0.40
codegen_flags: <defaults>
</compile_context>

<pallas_src>
import jax
import jax.numpy as jnp
from jax import lax
from jax.experimental import pallas as pl
from jax.experimental.pallas import tpu as pltpu

_SUBLANES = 8
_TILE_GRANULE = 1024  # 8 sublanes x 128 lanes of output -> unmasked, aligned stores


def _attention_kernel(h_src_ref, h_dst_ref, a_ref, o_ref):
    # h_*_ref: (tile_n, d) tiles; a_ref: (2, d) resident [a_src; a_dst]; o_ref: (1, tile_n)
    h_src = h_src_ref[...]
    h_dst = h_dst_ref[...]
    a = a_ref[...]
    if h_src.dtype != a.dtype:  # trace-time branch: mixed precision -> compute in f32
        h_src = h_src.astype(jnp.float32)
        h_dst = h_dst.astype(jnp.float32)
        a = a.astype(jnp.float32)
    # "NT" orientation (flash-attention q @ k^T pattern): contract the feature dim of
    # both operands. Small (1, d) lhs, big (tile_n, d) rhs; result (1, tile_n) is
    # lane-dense, and Mosaic does NOT materialize an XLU transpose of the large tile.
    dn = (((1,), (1,)), ((), ()))
    s = lax.dot_general(a[0:1, :], h_src, dn, preferred_element_type=jnp.float32)
    t = lax.dot_general(a[1:2, :], h_dst, dn, preferred_element_type=jnp.float32)
    e = s + t  # (1, tile_n), f32
    # leaky_relu, torch default negative_slope = 0.01
    o_ref[...] = jnp.where(e >= 0, e, jnp.float32(0.01) * e).astype(o_ref.dtype)


def _tpu_generation_params():
    """Return (tensorcores_per_chip, target_bytes_per_step, vmem_budget_bytes)."""
    kind = ""
    try:
        kind = jax.devices()[0].device_kind.lower()
    except Exception:
        pass
    if "v7" in kind or "7x" in kind:
        # v7x: 2 TensorCores/chip, 64 MiB physical VMEM (32 MiB default scoped limit),
        # ~3.2 TB/s HBM -> larger steps needed to amortize the ~0.35 us per-step cost.
        return 2, 6 << 20, 28 << 20
    # v5e / v6e (and unknown/fallback): single TensorCore, 128 MiB physical VMEM.
    return 1, 3 << 20, 64 << 20


def _round_up(x, m):
    return ((x + m - 1) // m) * m


def _choose_tiling(n, d, itemsize, num_cores, target_step_bytes, vmem_budget):
    """Pick (tile_n, num_tiles) for the HBM-bound score kernel."""
    bytes_per_row = 2 * d * itemsize  # one row of h_src + one row of h_dst per node
    # VMEM footprint per row: 2 inputs x 2 pipeline buffers x d, plus 2 output buffers.
    vmem_rows = vmem_budget // (4 * d * itemsize + 2 * itemsize)
    rows = max(_SUBLANES, min(target_step_bytes // bytes_per_row, vmem_rows))

    if n <= rows and num_cores == 1:
        # Whole problem in one full-dim block: one DMA pair, one store, no padding.
        return n, 1

    gran = _TILE_GRANULE if rows >= _TILE_GRANULE else _SUBLANES
    # Enough steps to hit the per-step byte target, and at least 2 per TensorCore
    # (double-buffered input DMAs per core; megacore split on v7x) ...
    steps = max(pl.cdiv(n, rows), 2 * num_cores)
    # ... but never shrink a step below one granule just to manufacture steps.
    steps = max(1, min(steps, n // gran))
    if steps <= 1:
        return n, 1
    tile = _round_up(pl.cdiv(n, steps), gran)
    tile = min(tile, max(gran, (vmem_rows // gran) * gran))  # respect the VMEM budget
    num_tiles = pl.cdiv(n, tile)
    return tile, num_tiles


def attention_forward(h_src, h_dst, a_src, a_dst, *, tile_n=None):
    """Pallas equivalent of Attention.forward.

    h_src, h_dst: [N, d]; a_src, a_dst: [d]. Returns [N].
    """
    N, d = h_src.shape
    assert h_dst.shape == (N, d)
    itemsize = jnp.dtype(h_src.dtype).itemsize
    num_cores, target_step_bytes, vmem_budget = _tpu_generation_params()

    if tile_n is None:
        tile_n, num_tiles = _choose_tiling(
            N, d, itemsize, num_cores, target_step_bytes, vmem_budget)
    else:
        num_tiles = pl.cdiv(N, tile_n)

    n_pad = tile_n * num_tiles
    if n_pad != N:  # pad awkward N up to a tile multiple; sliced off after the call
        h_src = jnp.pad(h_src, ((0, n_pad - N), (0, 0)))
        h_dst = jnp.pad(h_dst, ((0, n_pad - N), (0, 0)))

    # Attention vectors stacked into one resident (2, d) operand, kept in float32
    # (avoids downcasting the parameters when h streams in a lower precision).
    a2 = jnp.stack([a_src, a_dst], axis=0).astype(jnp.float32)

    cost = pl.CostEstimate(
        flops=4 * n_pad * d,  # two matvecs, 2 flops per MAC
        transcendentals=0,
        bytes_accessed=(2 * n_pad * d + n_pad) * itemsize
        + a2.size * a2.dtype.itemsize,
    )

    out = pl.pallas_call(
        _attention_kernel,
        out_shape=jax.ShapeDtypeStruct((1, n_pad), h_src.dtype),
        grid_spec=pltpu.PrefetchScalarGridSpec(
            num_scalar_prefetch=0,
            grid=(num_tiles,),
            in_specs=[
                pl.BlockSpec((tile_n, d), lambda i: (i, 0)),  # h_src tile
                pl.BlockSpec((tile_n, d), lambda i: (i, 0)),  # h_dst tile
                pl.BlockSpec((2, d), lambda i: (0, 0)),       # [a_src; a_dst] resident
            ],
            out_specs=pl.BlockSpec((1, tile_n), lambda i: (0, i)),  # lane-dense scores
        ),
        compiler_params=pltpu.CompilerParams(
            dimension_semantics=("parallel",),
            vmem_limit_bytes=int(vmem_budget),
        ),
        cost_estimate=cost,
    )(h_src, h_dst, a2)

    return out.reshape(-1)[:N]  # -> shape [N], same as the torch result


if __name__ == "__main__":
    key = jax.random.PRNGKey(0)
    k1, k2, k3, k4 = jax.random.split(key, 4)

    N, d = 256, 32  # small shapes: 256 nodes/edges, hidden dim 32

    # Deterministic "parameters" (module __init__: 0.1 * randn(d))
    a_src = 0.1 * jax.random.normal(k1, (d,), dtype=jnp.float32)
    a_dst = 0.1 * jax.random.normal(k2, (d,), dtype=jnp.float32)

    # Inputs
    h_src = jax.random.normal(k3, (N, d), dtype=jnp.float32)
    h_dst = jax.random.normal(k4, (N, d), dtype=jnp.float32)

    # 1) Auto-tiled path (small problem -> single block, no padding).
    out = attention_forward(h_src, h_dst, a_src, a_dst)
    out = jax.block_until_ready(out)

    e_ref = h_src @ a_src + h_dst @ a_dst
    ref = jnp.where(e_ref >= 0, e_ref, 0.01 * e_ref)
    assert out.shape == (N,)
    assert jnp.allclose(out, ref, atol=1e-5, rtol=1e-5)

    # 2) Forced multi-tile path with non-divisible N (exercises tiling + padding).
    N2 = 200
    out2 = attention_forward(h_src[:N2], h_dst[:N2], a_src, a_dst, tile_n=128)
    out2 = jax.block_until_ready(out2)
    assert out2.shape == (N2,)
    assert jnp.allclose(out2, ref[:N2], atol=1e-5, rtol=1e-5)

    print("KERNEL_OK")
</pallas_src>

<mosaic_0001>
module attributes {stable_mosaic.version = 11 : i64} {
  func.func @_attention_kernel(%arg0: i32, %arg1: memref<256x32xf32, #tpu.memory_space<vmem>>, %arg2: memref<256x32xf32, #tpu.memory_space<vmem>>, %arg3: memref<2x32xf32, #tpu.memory_space<vmem>>, %arg4: memref<1x256xf32, #tpu.memory_space<vmem>>) attributes {dimension_semantics = [#tpu.dimension_semantics<parallel>], iteration_bounds = array<i64: 1>, scalar_prefetch = 0 : i64, scratch_operands = 0 : i64, tpu.core_type = #tpu.core_type<tc>, window_params = [{transform_indices = @transform_0, window_bounds = array<i64: 256, 32>}, {transform_indices = @transform_1, window_bounds = array<i64: 256, 32>}, {pipeline_mode = #tpu.pipeline_mode<synchronous>, transform_indices = @transform_2, window_bounds = array<i64: 2, 32>}, {transform_indices = @transform_3, window_bounds = array<i64: 1, 256>}]} {
    %c0 = arith.constant 0 : index
    %c0_0 = arith.constant 0 : index
    %0 = vector.load %arg1[%c0, %c0_0] : memref<256x32xf32, #tpu.memory_space<vmem>>, vector<256x32xf32>
    %c0_1 = arith.constant 0 : index
    %c0_2 = arith.constant 0 : index
    %1 = vector.load %arg2[%c0_1, %c0_2] : memref<256x32xf32, #tpu.memory_space<vmem>>, vector<256x32xf32>
    %c0_3 = arith.constant 0 : index
    %c0_4 = arith.constant 0 : index
    %2 = vector.load %arg3[%c0_3, %c0_4] : memref<2x32xf32, #tpu.memory_space<vmem>>, vector<2x32xf32>
    %3 = vector.extract_strided_slice %2 {offsets = [0, 0], sizes = [1, 32], strides = [1, 1]} : vector<2x32xf32> to vector<1x32xf32>
    %cst = arith.constant dense<0.000000e+00> : vector<1x256xf32>
    %4 = tpu.matmul %3, %0, %cst {dimension_numbers = #tpu.dot_dimension_numbers<[1], [1], [0], [0], [0, 0, 1, 0], [], []>} : vector<1x32xf32>, vector<256x32xf32>, vector<1x256xf32> -> vector<1x256xf32>
    %5 = vector.extract_strided_slice %2 {offsets = [1, 0], sizes = [1, 32], strides = [1, 1]} : vector<2x32xf32> to vector<1x32xf32>
    %cst_5 = arith.constant dense<0.000000e+00> : vector<1x256xf32>
    %6 = tpu.matmul %5, %1, %cst_5 {dimension_numbers = #tpu.dot_dimension_numbers<[1], [1], [0], [0], [0, 0, 1, 0], [], []>} : vector<1x32xf32>, vector<256x32xf32>, vector<1x256xf32> -> vector<1x256xf32>
    %7 = arith.addf %4, %6 : vector<1x256xf32>
    %cst_6 = arith.constant 0.000000e+00 : f32
    %8 = vector.broadcast %cst_6 : f32 to vector<1x256xf32>
    %9 = arith.cmpf oge, %7, %8 : vector<1x256xf32>
    %cst_7 = arith.constant 0.00999999977 : f32
    %10 = vector.broadcast %cst_7 : f32 to vector<1x256xf32>
    %11 = arith.mulf %10, %7 : vector<1x256xf32>
    %12 = arith.select %9, %7, %11 : vector<1x256xi1>, vector<1x256xf32>
    %c0_8 = arith.constant 0 : index
    %c0_9 = arith.constant 0 : index
    %13 = vector.load %arg4[%c0_8, %c0_9] : memref<1x256xf32, #tpu.memory_space<vmem>>, vector<1x256xf32>
    tpu.vector_store %arg4[%c0_8, %c0_9], %12 {strides = array<i32>} : memref<1x256xf32, #tpu.memory_space<vmem>>, vector<1x256xf32>,
    return
  }
  func.func @transform_0(%arg0: i32) -> (i32, i32) {
    %c0_i32 = arith.constant 0 : i32
    %c0_i32_0 = arith.constant 0 : i32
    return %arg0, %c0_i32 : i32, i32
  }
  func.func @transform_1(%arg0: i32) -> (i32, i32) {
    %c0_i32 = arith.constant 0 : i32
    %c0_i32_0 = arith.constant 0 : i32
    return %arg0, %c0_i32 : i32, i32
  }
  func.func @transform_2(%arg0: i32) -> (i32, i32) {
    %c0_i32 = arith.constant 0 : i32
    %c0_i32_0 = arith.constant 0 : i32
    %c0_i32_1 = arith.constant 0 : i32
    return %c0_i32, %c0_i32_0 : i32, i32
  }
  func.func @transform_3(%arg0: i32) -> (i32, i32) {
    %c0_i32 = arith.constant 0 : i32
    %c0_i32_0 = arith.constant 0 : i32
    return %c0_i32, %arg0 : i32, i32
  }
}

</mosaic_0001>

<llo_original>
// kernel: tpu_custom_call.1
$region0: #{tpu_custom_call.1}
  #allocation0 [shape = 'u32[]', space=smem, size = 0x4, offset = 0x4, fixed_abs, tag = 'smem constant byte address 0x4 - core index']
  #allocation1 [shape = 'u32[144,128]{1,0:T(1,128)}', space=vmem, size = 0x12000, scoped, tag = 'internal scratch']
  %s0 = inlined_call_operand.hbm [shape: f32[256,32], index: 0, kind: input, shape index: {}]
  %s1 = inlined_call_operand.hbm [shape: f32[256,32], index: 1, kind: input, shape index: {}]
  %s2 = inlined_call_operand.hbm [shape: f32[2,32], index: 2, kind: input, shape index: {}]
  %s3 = inlined_call_operand.hbm [shape: f32[1,256], index: 3, kind: output, shape index: {}]
  %s4 = sld [smem:[#allocation0]]
  $region34: #{tpu_custom_call.1} parent=0
    _
  %s6 = ssub.s32 1, %s4
  %s7 = scalar_select 0, %s6, %s4
  $region1: #{tpu_custom_call.1} parent=0
    #allocation2 [shape = 'u8[131072]{0}', space=vmem, size = 0x20000, scoped, tag = 'input window, operand 0, single buffered']
    #allocation3 [shape = 's32[1]{0}', space=sflag, size = 0x4, scoped, tag = 'scoped memory for tpu_custom_call.1']
    #allocation4 [shape = 's32[1]{0}', space=sflag, size = 0x4, scoped, tag = 'scoped memory for tpu_custom_call.1']
    #allocation5 [shape = 'u8[131072]{0}', space=vmem, size = 0x20000, scoped, tag = 'input window, operand 1, single buffered']
    #allocation6 [shape = 's32[1]{0}', space=sflag, size = 0x4, scoped, tag = 'scoped memory for tpu_custom_call.1']
    #allocation7 [shape = 'u8[1024]{0}', space=vmem, size = 0x400, scoped, tag = 'input window, operand 2, single buffered']
    #allocation8 [shape = 'u8[1024]{0}', space=vmem, size = 0x400, scoped, tag = 'output window, operand 0, single buffered']
    %8 = vsyncpa [#allocation3], 0
    %9 = vsyncpa [#allocation6], 0
    %10 = vsyncpa [#allocation4], 0
    // Predicated region
    $region2: #{tpu_custom_call.1} parent=1 // pred_check
      _
    $region3: #{tpu_custom_call.1} parent=1 // pred_check_branch
      %12 = sbr.rel (0) target = $region5
    $region4: #{tpu_custom_call.1} parent=1 // pred_region
      %s14 = ssub.s32 4096, 4096
      %15 = vsyncadd [#allocation3], %s14
      %s16 = sshll.u32 [#allocation2], 4
      %s17 = int_to_ptr.vmem [resolvable:$true] %s16
      %22 = dma.hbm_to_vmem [thread:$0]  %s0, 4096, %s17, [#allocation3], 128, 128, 8
    $region5: #{tpu_custom_call.1} parent=1 // pred_fallthru
      _
    // Predicated region
    $region6: #{tpu_custom_call.1} parent=1 // pred_check
      _
    $region7: #{tpu_custom_call.1} parent=1 // pred_check_branch
      %24 = sbr.rel (0) target = $region9
    $region8: #{tpu_custom_call.1} parent=1 // pred_region
      %s26 = ssub.s32 4096, 4096
      %27 = vsyncadd [#allocation6], %s26
      %s28 = sshll.u32 [#allocation5], 4
      %s29 = int_to_ptr.vmem [resolvable:$true] %s28
      %34 = dma.hbm_to_vmem [thread:$0]  %s1, 4096, %s29, [#allocation6], 128, 128, 8
    $region9: #{tpu_custom_call.1} parent=1 // pred_fallthru
      _
    // Predicated region
    $region10: #{tpu_custom_call.1} parent=1 // pred_check
      _
    $region11: #{tpu_custom_call.1} parent=1 // pred_check_branch
      %36 = sbr.rel (0) target = $region13
    $region12: #{tpu_custom_call.1} parent=1 // pred_region
      %s38 = ssub.s32 32, 32
      %39 = vsyncadd [#allocation6], %s38
      %s41 = sshll.u32 [#allocation7], 4
      %s42 = int_to_ptr.vmem [resolvable:$true] %s41
      %44 = dma.hbm_to_vmem [thread:$0]  %s2, 32, %s42, [#allocation6]
    $region13: #{tpu_custom_call.1} parent=1 // pred_fallthru
      _
    // Predicated region
    $region14: #{tpu_custom_call.1} parent=1 // pred_check
      _
    $region15: #{tpu_custom_call.1} parent=1 // pred_check_branch
      %46 = sbr.rel (0) target = $region17
    $region16: #{tpu_custom_call.1} parent=1 // pred_region
      %47 = dma.done [#allocation3], 4096
    $region17: #{tpu_custom_call.1} parent=1 // pred_fallthru
      _
    // Predicated region
    $region18: #{tpu_custom_call.1} parent=1 // pred_check
      _
    $region19: #{tpu_custom_call.1} parent=1 // pred_check_branch
      %49 = sbr.rel (0) target = $region21
    $region20: #{tpu_custom_call.1} parent=1 // pred_region
      %50 = dma.done [#allocation6], 4096
    $region21: #{tpu_custom_call.1} parent=1 // pred_fallthru
      _
    // Predicated region
    $region22: #{tpu_custom_call.1} parent=1 // pred_check
      _
    $region23: #{tpu_custom_call.1} parent=1 // pred_check_branch
      %52 = sbr.rel (0) target = $region25
    $region24: #{tpu_custom_call.1} parent=1 // pred_region
      %53 = dma.done [#allocation6], 32
    $region25: #{tpu_custom_call.1} parent=1 // pred_fallthru
      _
    %v54 = vld [vmem:[#allocation2] sm:$0xff]
    %v55 = vld [vmem:[#allocation2 + $0x8] sm:$0xff]
    %v56 = vld [vmem:[#allocation2 + $0x10] sm:$0xff]
    %v57 = vld [vmem:[#allocation2 + $0x18] sm:$0xff]
    %v58 = vld [vmem:[#allocation2 + $0x20] sm:$0xff]
    %v59 = vld [vmem:[#allocation2 + $0x28] sm:$0xff]
    %v60 = vld [vmem:[#allocation2 + $0x30] sm:$0xff]
    %v61 = vld [vmem:[#allocation2 + $0x38] sm:$0xff]
    %v62 = vld [vmem:[#allocation2 + $0x40] sm:$0xff]
    %v63 = vld [vmem:[#allocation2 + $0x48] sm:$0xff]
    %v64 = vld [vmem:[#allocation2 + $0x50] sm:$0xff]
    %v65 = vld [vmem:[#allocation2 + $0x58] sm:$0xff]
    %v66 = vld [vmem:[#allocation2 + $0x60] sm:$0xff]
    %v67 = vld [vmem:[#allocation2 + $0x68] sm:$0xff]
    %v68 = vld [vmem:[#allocation2 + $0x70] sm:$0xff]
    %v69 = vld [vmem:[#allocation2 + $0x78] sm:$0xff]
    %v70 = vld [vmem:[#allocation2 + $0x80] sm:$0xff]
    %v71 = vld [vmem:[#allocation2 + $0x88] sm:$0xff]
    %v72 = vld [vmem:[#allocation2 + $0x90] sm:$0xff]
    %v73 = vld [vmem:[#allocation2 + $0x98] sm:$0xff]
    %v74 = vld [vmem:[#allocation2 + $0xa0] sm:$0xff]
    %v75 = vld [vmem:[#allocation2 + $0xa8] sm:$0xff]
    %v76 = vld [vmem:[#allocation2 + $0xb0] sm:$0xff]
    %v77 = vld [vmem:[#allocation2 + $0xb8] sm:$0xff]
    %v78 = vld [vmem:[#allocation2 + $0xc0] sm:$0xff]
    %v79 = vld [vmem:[#allocation2 + $0xc8] sm:$0xff]
    %v80 = vld [vmem:[#allocation2 + $0xd0] sm:$0xff]
    %v81 = vld [vmem:[#allocation2 + $0xd8] sm:$0xff]
    %v82 = vld [vmem:[#allocation2 + $0xe0] sm:$0xff]
    %v83 = vld [vmem:[#allocation2 + $0xe8] sm:$0xff]
    %v84 = vld [vmem:[#allocation2 + $0xf0] sm:$0xff]
    %v85 = vld [vmem:[#allocation2 + $0xf8] sm:$0xff]
    %v86 = vld [vmem:[#allocation5] sm:$0xff]
    %v87 = vld [vmem:[#allocation5 + $0x8] sm:$0xff]
    %v88 = vld [vmem:[#allocation5 + $0x10] sm:$0xff]
    %v89 = vld [vmem:[#allocation5 + $0x18] sm:$0xff]
    %v90 = vld [vmem:[#allocation5 + $0x20] sm:$0xff]
    %v91 = vld [vmem:[#allocation5 + $0x28] sm:$0xff]
    %v92 = vld [vmem:[#allocation5 + $0x30] sm:$0xff]
    %v93 = vld [vmem:[#allocation5 + $0x38] sm:$0xff]
    %v94 = vld [vmem:[#allocation5 + $0x40] sm:$0xff]
    %v95 = vld [vmem:[#allocation5 + $0x48] sm:$0xff]
    %v96 = vld [vmem:[#allocation5 + $0x50] sm:$0xff]
    %v97 = vld [vmem:[#allocation5 + $0x58] sm:$0xff]
    %v98 = vld [vmem:[#allocation5 + $0x60] sm:$0xff]
    %v99 = vld [vmem:[#allocation5 + $0x68] sm:$0xff]
    %v100 = vld [vmem:[#allocation5 + $0x70] sm:$0xff]
    %v101 = vld [vmem:[#allocation5 + $0x78] sm:$0xff]
    %v102 = vld [vmem:[#allocation5 + $0x80] sm:$0xff]
    %v103 = vld [vmem:[#allocation5 + $0x88] sm:$0xff]
    %v104 = vld [vmem:[#allocation5 + $0x90] sm:$0xff]
    %v105 = vld [vmem:[#allocation5 + $0x98] sm:$0xff]
    %v106 = vld [vmem:[#allocation5 + $0xa0] sm:$0xff]
    %v107 = vld [vmem:[#allocation5 + $0xa8] sm:$0xff]
    %v108 = vld [vmem:[#allocation5 + $0xb0] sm:$0xff]
    %v109 = vld [vmem:[#allocation5 + $0xb8] sm:$0xff]
    %v110 = vld [vmem:[#allocation5 + $0xc0] sm:$0xff]
    %v111 = vld [vmem:[#allocation5 + $0xc8] sm:$0xff]
    %v112 = vld [vmem:[#allocation5 + $0xd0] sm:$0xff]
    %v113 = vld [vmem:[#allocation5 + $0xd8] sm:$0xff]
    %v114 = vld [vmem:[#allocation5 + $0xe0] sm:$0xff]
    %v115 = vld [vmem:[#allocation5 + $0xe8] sm:$0xff]
    %v116 = vld [vmem:[#allocation5 + $0xf0] sm:$0xff]
    %v117 = vld [vmem:[#allocation5 + $0xf8] sm:$0xff]
    %v118 = vld [vmem:[#allocation7] sm:$0x3]
    %v120 = vrot.slane %v118, 1
    %vm121 = vcmask 261120
    %v122 = vsel %vm121, %v120, 0
    %v125 = vsel %vm121, %v86, 0
    %v128 = vsel %vm121, %v87, 0
    %v131 = vsel %vm121, %v88, 0
    %v134 = vsel %vm121, %v89, 0
    %v137 = vsel %vm121, %v90, 0
    %v140 = vsel %vm121, %v91, 0
    %v143 = vsel %vm121, %v92, 0
    %v146 = vsel %vm121, %v93, 0
    %v149 = vsel %vm121, %v94, 0
    %v152 = vsel %vm121, %v95, 0
    %v155 = vsel %vm121, %v96, 0
    %v158 = vsel %vm121, %v97, 0
    %v161 = vsel %vm121, %v98, 0
    %v164 = vsel %vm121, %v99, 0
    %v167 = vsel %vm121, %v100, 0
    %v170 = vsel %vm121, %v101, 0
    %v173 = vsel %vm121, %v102, 0
    %v176 = vsel %vm121, %v103, 0
    %v179 = vsel %vm121, %v104, 0
    %v182 = vsel %vm121, %v105, 0
    %v185 = vsel %vm121, %v106, 0
    %v188 = vsel %vm121, %v107, 0
    %v191 = vsel %vm121, %v108, 0
    %v194 = vsel %vm121, %v109, 0
    %v197 = vsel %vm121, %v110, 0
    %v200 = vsel %vm121, %v111, 0
    %v203 = vsel %vm121, %v112, 0
    %v206 = vsel %vm121, %v113, 0
    %v209 = vsel %vm121, %v114, 0
    %v212 = vsel %vm121, %v115, 0
    %v215 = vsel %vm121, %v116, 0
    %v218 = vsel %vm121, %v117, 0
    %220 = vmatprep.subr.mxu0 0.0
    %221 = vmatpush1.xpose.msra.mxu0 %v125
    %222 = vmatprep.subr.mxu0 0.0
    %223 = vmatpush1.xpose.msra.mxu0 %v128
    %224 = vmatprep.subr.mxu0 0.0
    %225 = vmatpush1.xpose.msra.mxu0 %v131
    %226 = vmatprep.subr.mxu0 0.0
    %227 = vmatpush1.xpose.msra.mxu0 %v134
    %228 = vmatprep.subr.mxu0 0.0
    %229 = vmatpush1.xpose.msra.mxu0 %v137
    %230 = vmatprep.subr.mxu0 0.0
    %231 = vmatpush1.xpose.msra.mxu0 %v140
    %232 = vmatprep.subr.mxu0 0.0
    %233 = vmatpush1.xpose.msra.mxu0 %v143
    %234 = vmatprep.subr.mxu0 0.0
    %235 = vmatpush1.xpose.msra.mxu0 %v146
    %236 = vmatprep.subr.mxu0 0.0
    %237 = vmatpush1.xpose.msra.mxu0 %v149
    %238 = vmatprep.subr.mxu0 0.0
    %239 = vmatpush1.xpose.msra.mxu0 %v152
    %240 = vmatprep.subr.mxu0 0.0
    %241 = vmatpush1.xpose.msra.mxu0 %v155
    %242 = vmatprep.subr.mxu0 0.0
    %243 = vmatpush1.xpose.msra.mxu0 %v158
    %244 = vmatprep.subr.mxu0 0.0
    %245 = vmatpush1.xpose.msra.mxu0 %v161
    %246 = vmatprep.subr.mxu0 0.0
    %247 = vmatpush1.xpose.msra.mxu0 %v164
    %248 = vmatprep.subr.mxu0 0.0
    %249 = vmatpush1.xpose.msra.mxu0 %v167
    %250 = vmatprep.subr.mxu0 0.0
    %251 = vmatpush1.xpose.msra.mxu0 %v170
    %252 = vmatprep.subr.mxu0 0.0
    %253 = vmatpush1.xpose.msra.mxu0 %v173
    %254 = vmatprep.subr.mxu0 0.0
    %255 = vmatpush1.xpose.msra.mxu0 %v176
    %256 = vmatprep.subr.mxu0 0.0
    %257 = vmatpush1.xpose.msra.mxu0 %v179
    %258 = vmatprep.subr.mxu0 0.0
    %259 = vmatpush1.xpose.msra.mxu0 %v182
    %260 = vmatprep.subr.mxu0 0.0
    %261 = vmatpush1.xpose.msra.mxu0 %v185
    %262 = vmatprep.subr.mxu0 0.0
    %263 = vmatpush1.xpose.msra.mxu0 %v188
    %264 = vmatprep.subr.mxu0 0.0
    %265 = vmatpush1.xpose.msra.mxu0 %v191
    %266 = vmatprep.subr.mxu0 0.0
    %267 = vmatpush1.xpose.msra.mxu0 %v194
    %268 = vmatprep.subr.mxu0 0.0
    %269 = vmatpush1.xpose.msra.mxu0 %v197
    %270 = vmatprep.subr.mxu0 0.0
    %271 = vmatpush1.xpose.msra.mxu0 %v200
    %272 = vmatprep.subr.mxu0 0.0
    %273 = vmatpush1.xpose.msra.mxu0 %v203
    %274 = vmatprep.subr.mxu0 0.0
    %275 = vmatpush1.xpose.msra.mxu0 %v206
    %276 = vmatprep.subr.mxu0 0.0
    %277 = vmatpush1.xpose.msra.mxu0 %v209
    %278 = vmatprep.subr.mxu0 0.0
    %279 = vmatpush1.xpose.msra.mxu0 %v212
    %280 = vmatprep.subr.mxu0 0.0
    %281 = vmatpush1.xpose.msra.mxu0 %v215
    %282 = vmatprep.subr.mxu0 0.0
    %283 = vmatpush1.xpose.msra.mxu0 %v218
    %284 = vmatprep.mubr.f32.mxu0 0.0
    %285 = vmatmul.mubr.f32.gmra.mrb[0].mxu0 %v122
    %v286 = vpop.f32.mrb[0].mxu0
    %v287 = vadd.f32 0.0, %v286
    %v288 = vpop.f32.mrb[0].mxu0
    %v289 = vadd.f32 0.0, %v288
    %290 = vdwg.mxu0
    %v291 = vsel %vm121, %v118, 0
    %v294 = vsel %vm121, %v54, 0
    %v297 = vsel %vm121, %v55, 0
    %v300 = vsel %vm121, %v56, 0
    %v303 = vsel %vm121, %v57, 0
    %v306 = vsel %vm121, %v58, 0
    %v309 = vsel %vm121, %v59, 0
    %v312 = vsel %vm121, %v60, 0
    %v315 = vsel %vm121, %v61, 0
    %v318 = vsel %vm121, %v62, 0
    %v321 = vsel %vm121, %v63, 0
    %v324 = vsel %vm121, %v64, 0
    %v327 = vsel %vm121, %v65, 0
    %v330 = vsel %vm121, %v66, 0
    %v333 = vsel %vm121, %v67, 0
    %v336 = vsel %vm121, %v68, 0
    %v339 = vsel %vm121, %v69, 0
    %v342 = vsel %vm121, %v70, 0
    %v345 = vsel %vm121, %v71, 0
    %v348 = vsel %vm121, %v72, 0
    %v351 = vsel %vm121, %v73, 0
    %v354 = vsel %vm121, %v74, 0
    %v357 = vsel %vm121, %v75, 0
    %v360 = vsel %vm121, %v76, 0
    %v363 = vsel %vm121, %v77, 0
    %v366 = vsel %vm121, %v78, 0
    %v369 = vsel %vm121, %v79, 0
    %v372 = vsel %vm121, %v80, 0
    %v375 = vsel %vm121, %v81, 0
    %v378 = vsel %vm121, %v82, 0
    %v381 = vsel %vm121, %v83, 0
    %v384 = vsel %vm121, %v84, 0
    %v387 = vsel %vm121, %v85, 0
    %389 = vmatprep.subr.mxu0 0.0
    %390 = vmatpush1.xpose.msra.mxu0 %v294
    %391 = vmatprep.subr.mxu0 0.0
    %392 = vmatpush1.xpose.msra.mxu0 %v297
    %393 = vmatprep.subr.mxu0 0.0
    %394 = vmatpush1.xpose.msra.mxu0 %v300
    %395 = vmatprep.subr.mxu0 0.0
    %396 = vmatpush1.xpose.msra.mxu0 %v303
    %397 = vmatprep.subr.mxu0 0.0
    %398 = vmatpush1.xpose.msra.mxu0 %v306
    %399 = vmatprep.subr.mxu0 0.0
    %400 = vmatpush1.xpose.msra.mxu0 %v309
    %401 = vmatprep.subr.mxu0 0.0
    %402 = vmatpush1.xpose.msra.mxu0 %v312
    %403 = vmatprep.subr.mxu0 0.0
    %404 = vmatpush1.xpose.msra.mxu0 %v315
    %405 = vmatprep.subr.mxu0 0.0
    %406 = vmatpush1.xpose.msra.mxu0 %v318
    %407 = vmatprep.subr.mxu0 0.0
    %408 = vmatpush1.xpose.msra.mxu0 %v321
    %409 = vmatprep.subr.mxu0 0.0
    %410 = vmatpush1.xpose.msra.mxu0 %v324
    %411 = vmatprep.subr.mxu0 0.0
    %412 = vmatpush1.xpose.msra.mxu0 %v327
    %413 = vmatprep.subr.mxu0 0.0
    %414 = vmatpush1.xpose.msra.mxu0 %v330
    %415 = vmatprep.subr.mxu0 0.0
    %416 = vmatpush1.xpose.msra.mxu0 %v333
    %417 = vmatprep.subr.mxu0 0.0
    %418 = vmatpush1.xpose.msra.mxu0 %v336
    %419 = vmatprep.subr.mxu0 0.0
    %420 = vmatpush1.xpose.msra.mxu0 %v339
    %421 = vmatprep.subr.mxu0 0.0
    %422 = vmatpush1.xpose.msra.mxu0 %v342
    %423 = vmatprep.subr.mxu0 0.0
    %424 = vmatpush1.xpose.msra.mxu0 %v345
    %425 = vmatprep.subr.mxu0 0.0
    %426 = vmatpush1.xpose.msra.mxu0 %v348
    %427 = vmatprep.subr.mxu0 0.0
    %428 = vmatpush1.xpose.msra.mxu0 %v351
    %429 = vmatprep.subr.mxu0 0.0
    %430 = vmatpush1.xpose.msra.mxu0 %v354
    %431 = vmatprep.subr.mxu0 0.0
    %432 = vmatpush1.xpose.msra.mxu0 %v357
    %433 = vmatprep.subr.mxu0 0.0
    %434 = vmatpush1.xpose.msra.mxu0 %v360
    %435 = vmatprep.subr.mxu0 0.0
    %436 = vmatpush1.xpose.msra.mxu0 %v363
    %437 = vmatprep.subr.mxu0 0.0
    %438 = vmatpush1.xpose.msra.mxu0 %v366
    %439 = vmatprep.subr.mxu0 0.0
    %440 = vmatpush1.xpose.msra.mxu0 %v369
    %441 = vmatprep.subr.mxu0 0.0
    %442 = vmatpush1.xpose.msra.mxu0 %v372
    %443 = vmatprep.subr.mxu0 0.0
    %444 = vmatpush1.xpose.msra.mxu0 %v375
    %445 = vmatprep.subr.mxu0 0.0
    %446 = vmatpush1.xpose.msra.mxu0 %v378
    %447 = vmatprep.subr.mxu0 0.0
    %448 = vmatpush1.xpose.msra.mxu0 %v381
    %449 = vmatprep.subr.mxu0 0.0
    %450 = vmatpush1.xpose.msra.mxu0 %v384
    %451 = vmatprep.subr.mxu0 0.0
    %452 = vmatpush1.xpose.msra.mxu0 %v387
    %453 = vmatprep.mubr.f32.mxu0 0.0
    %454 = vmatmul.mubr.f32.gmra.mrb[0].mxu0 %v291
    %v455 = vpop.f32.mrb[0].mxu0
    %v456 = vadd.f32 %v287, %v455
    %v457 = vpop.f32.mrb[0].mxu0
    %v458 = vadd.f32 %v289, %v457
    %459 = vdwg.mxu0
    %vm460 = vcmp.ge.f32.partialorder %v456, 0.0
    %vm461 = vcmp.ge.f32.partialorder %v458, 0.0
    %v462 = vmul.f32 %v456, 0.01
    %v463 = vmul.f32 %v458, 0.01
    %v464 = vsel %vm460, %v456, %v462
    %v465 = vsel %vm461, %v458, %v463
    %v468 = vcombine.low %v464, %v465
    %v470 = vunpack.c.l.s4 1966171168
    %v471 = vunpack.c.0.s8 %v470
    %v472 = vlaneseq
    %v473 = vshrl.u32 %v472, 7
    %v474 = vsub.s32 %v471, %v473
    %v475 = vrot.slane %v468, %v474
    %v477 = vunpack.c.l.s4 1966171168
    %v478 = vunpack.c.0.s8 %v477
    %v479 = vlaneseq
    %v480 = vshrl.u32 %v479, 7
    %v481 = vsub.s32 %v478, %v480
    %v482 = vrot.slane %v475, %v481
    %v484 = vlaneseq
    %vm485 = vcmp.ge.s32.totalorder %v484, 0
    %vm486 = vcmp.lt.s32.totalorder %v484, 256
    %vm487 = vmand %vm485, %vm486
    %488 = vst.msk [vmem:[#allocation8] sm:$0x3] %vm487, %v482
    // Predicated region
    $region26: #{tpu_custom_call.1} parent=1 // pred_check
      _
    $region27: #{tpu_custom_call.1} parent=1 // pred_check_branch
      %490 = sbr.rel (0) target = $region29
    $region28: #{tpu_custom_call.1} parent=1 // pred_region
      %s492 = ssub.s32 32, 32
      %493 = vsyncadd [#allocation4], %s492
      %s495 = sshll.u32 [#allocation8], 4
      %s496 = int_to_ptr.vmem [resolvable:$true] %s495
      %498 = dma.vmem_to_hbm [thread:$0]  %s496, 32, %s3, [#allocation4]
    $region29: #{tpu_custom_call.1} parent=1 // pred_fallthru
      _
    // Predicated region
    $region30: #{tpu_custom_call.1} parent=1 // pred_check
      _
    $region31: #{tpu_custom_call.1} parent=1 // pred_check_branch
      %500 = sbr.rel (0) target = $region33
    $region32: #{tpu_custom_call.1} parent=1 // pred_region
      %501 = dma.done [#allocation4], 32
    $region33: #{tpu_custom_call.1} parent=1 // pred_fallthru
      _
    %502 = vsyncpa [#allocation3], 1
    %503 = vsyncpa [#allocation6], 1
    %504 = vsyncpa [#allocation4], 1

</llo_original>
